<compile_context>
chip_gen: v5e
topology: v5e:2x2
jax: 0.10.0
libtpu: 0.0.40
codegen_flags: <defaults>
</compile_context>

<pallas_src>
from functools import partial

import jax
import jax.numpy as jnp
import numpy as np
from jax.experimental import pallas as pl
from jax.experimental.pallas import tpu as pltpu


def _make_ctc_kernel(blank: int):
    def ctc_kernel(e_ref, out_ref):
        # e_ref: [L, TM] logits, time on lanes.  Compare math stays f32 even
        # if the HBM stream is bf16 (callers may pass bf16 to halve read
        # traffic on v5e).
        e = e_ref[...].astype(jnp.float32)
        L, TM = e.shape

        # argmax over the label (sublane) axis with first-occurrence
        # tie-break (matches torch.argmax): min index among the maxima.
        m = jnp.max(e, axis=0, keepdims=True)                        # [1, TM]
        lbl = jax.lax.broadcasted_iota(jnp.int32, (L, TM), 0)
        idx = jnp.min(jnp.where(e == m, lbl, L), axis=0, keepdims=True)
        # all-NaN column guard: e == m can be all-false -> idx == L; clamp so
        # the host label lookup never indexes out of range.
        idx = jnp.minimum(idx, L - 1).astype(jnp.int32)              # [1, TM]

        # unique_consecutive + blank removal as a keep mask (lane roll -> XLU,
        # which has slack; this is free next to the HBM read).
        prev = pltpu.roll(idx, shift=1, axis=1)
        col = jax.lax.broadcasted_iota(jnp.int32, (1, TM), 1)
        first_of_run = jnp.logical_or(col == 0, idx != prev)   # lane 0 fixed on host
        keep = jnp.logical_and(first_of_run, idx != blank)

        # Pack (keep, idx) into a single lane-dense int32 row.
        out_ref[...] = jnp.where(keep, idx, -idx - 1)

    return ctc_kernel


@partial(jax.jit, static_argnums=(1, 2))
def _ctc_packed_call(emission, blank: int, tm: int):
    """emission: [T, L] logits -> packed int32 [1, T] (idx if kept, ~idx if dropped)."""
    T, L = emission.shape
    e_lt = emission.T                 # [L, T]: time on lanes, labels on sublanes
    grid = (pl.cdiv(T, tm),)
    return pl.pallas_call(
        _make_ctc_kernel(blank),
        out_shape=jax.ShapeDtypeStruct((1, T), jnp.int32),
        grid=grid,
        in_specs=[pl.BlockSpec((L, tm), lambda i: (0, i))],
        out_specs=pl.BlockSpec((1, tm), lambda i: (0, i)),
        compiler_params=pltpu.CompilerParams(
            # Tiles are independent (cross-tile run collapse fixed on host),
            # so the T axis can be split across v7x's two TensorCores.
            dimension_semantics=("parallel",),
            vmem_limit_bytes=32 * 1024 * 1024,
        ),
    )(e_lt)


def greedy_ctc_packed(emission, blank: int = 0, tile_t: int = 4096):
    """Run the Pallas kernel. Returns (packed [1, T] int32 device array, tile size used)."""
    T, _ = emission.shape
    tm = T if T <= tile_t else tile_t
    if tm != T and tm % 128 != 0:
        raise ValueError("tile_t must be a multiple of 128 when tiling is active")
    return _ctc_packed_call(emission, blank, tm), tm


def decode_packed(packed, labels, tm: int) -> str:
    """Host-side tail: vectorized keep/index recovery + boundary fixup + join."""
    p = np.asarray(packed).reshape(-1)              # single D2H transfer
    raw = np.where(p >= 0, p, -p - 1)               # raw argmax indices
    keep = p >= 0
    T = p.shape[0]
    if tm < T:
        # Cross-tile unique_consecutive fixup: drop a tile's first element if
        # it continues the previous tile's last run.
        b = np.arange(tm, T, tm)
        keep[b] &= raw[b] != raw[b - 1]
    labels_arr = np.asarray(labels)
    # Host-side string assembly (no Pallas equivalent for string building).
    return "".join(labels_arr[raw[keep]])


def greedy_ctc_decode(emission, labels, blank: int = 0, tile_t: int = 4096) -> str:
    """emission: [num_seq, num_label] logits -> transcript string."""
    packed, tm = greedy_ctc_packed(emission, blank=blank, tile_t=tile_t)
    packed = jax.block_until_ready(packed)
    return decode_packed(packed, labels, tm)


def _ctc_reference(emission_np, labels, blank: int = 0) -> str:
    """Pure-numpy reference of the PyTorch semantics."""
    idx = np.argmax(emission_np, axis=-1)
    collapsed = [idx[0]] + [b for a, b in zip(idx[:-1], idx[1:]) if b != a]
    return "".join(labels[int(i)] for i in collapsed if int(i) != blank)


if __name__ == "__main__":
    labels = ["-"] + [chr(ord("a") + i) for i in range(26)] + list("'.?! ")
    L = len(labels)                    # 32 labels, blank at index 0
    key = jax.random.PRNGKey(0)
    k1, k2, k3 = jax.random.split(key, 3)

    # Case 1: tiny shape matching the module docstring ([num_seq, num_label]).
    em_small = jax.random.normal(k1, (8, L), dtype=jnp.float32)
    out_small = greedy_ctc_decode(em_small, labels, blank=0)
    assert out_small == _ctc_reference(np.asarray(em_small), labels, blank=0), out_small

    # Case 2: longer sequence exercising the tiled / "parallel" path.  Runs of
    # length 5 deliberately straddle the 512-wide tile boundaries so the
    # cross-tile unique_consecutive fixup is exercised.
    T, tile_t, run_len = 2048, 512, 5
    run_ids = jax.random.randint(k2, (T // run_len + 1,), 0, L)
    seq = jnp.repeat(run_ids, run_len)[:T]
    em_big = (5.0 * jax.nn.one_hot(seq, L, dtype=jnp.float32)
              + 0.1 * jax.random.normal(k3, (T, L), dtype=jnp.float32))

    packed, tm = greedy_ctc_packed(em_big, blank=0, tile_t=tile_t)
    packed = jax.block_until_ready(packed)
    out_big = decode_packed(packed, labels, tm)
    assert out_big == _ctc_reference(np.asarray(em_big), labels, blank=0), out_big

    print("KERNEL_OK")
</pallas_src>

<mosaic_0001>
module attributes {stable_mosaic.version = 11 : i64} {
  func.func @ctc_kernel(%arg0: i32, %arg1: memref<32x8xf32, #tpu.memory_space<vmem>>, %arg2: memref<1x8xi32, #tpu.memory_space<vmem>>) attributes {dimension_semantics = [#tpu.dimension_semantics<parallel>], iteration_bounds = array<i64: 1>, scalar_prefetch = 0 : i64, scratch_operands = 0 : i64, tpu.core_type = #tpu.core_type<tc>, window_params = [{transform_indices = @transform_0, window_bounds = array<i64: 32, 8>}, {transform_indices = @transform_1, window_bounds = array<i64: 1, 8>}]} {
    %c0 = arith.constant 0 : index
    %c0_0 = arith.constant 0 : index
    %0 = vector.load %arg1[%c0, %c0_0] : memref<32x8xf32, #tpu.memory_space<vmem>>, vector<32x8xf32>
    %cst = arith.constant dense<0xFF800000> : vector<8xf32>
    %1 = vector.multi_reduction <maximumf>, %0, %cst [0] : vector<32x8xf32> to vector<8xf32>
    %2 = vector.shape_cast %1 : vector<8xf32> to vector<1x8xf32>
    %3 = tpu.iota {dimensions = array<i32: 0>} : vector<32x8xi32>
    %4 = vector.broadcast %2 : vector<1x8xf32> to vector<32x8xf32>
    %5 = arith.cmpf oeq, %0, %4 : vector<32x8xf32>
    %c32_i32 = arith.constant 32 : i32
    %6 = vector.broadcast %c32_i32 : i32 to vector<32x8xi32>
    %7 = arith.select %5, %3, %6 : vector<32x8xi1>, vector<32x8xi32>
    %cst_1 = arith.constant dense<2147483647> : vector<8xi32>
    %8 = vector.multi_reduction <minsi>, %7, %cst_1 [0] : vector<32x8xi32> to vector<8xi32>
    %9 = vector.shape_cast %8 : vector<8xi32> to vector<1x8xi32>
    %c31_i32 = arith.constant 31 : i32
    %10 = vector.broadcast %c31_i32 : i32 to vector<1x8xi32>
    %11 = arith.minsi %9, %10 : vector<1x8xi32>
    %c1_i32 = arith.constant 1 : i32
    %12 = tpu.dynamic_rotate %11 by %c1_i32 dim 1 : vector<1x8xi32>, i32 -> vector<1x8xi32>
    %13 = tpu.iota {dimensions = array<i32: 1>} : vector<1x8xi32>
    %c0_i32 = arith.constant 0 : i32
    %14 = vector.broadcast %c0_i32 : i32 to vector<1x8xi32>
    %15 = arith.cmpi eq, %13, %14 : vector<1x8xi32>
    %16 = arith.cmpi ne, %11, %12 : vector<1x8xi32>
    %17 = arith.ori %15, %16 : vector<1x8xi1>
    %c0_i32_2 = arith.constant 0 : i32
    %18 = vector.broadcast %c0_i32_2 : i32 to vector<1x8xi32>
    %19 = arith.cmpi ne, %11, %18 : vector<1x8xi32>
    %20 = arith.andi %17, %19 : vector<1x8xi1>
    %c0_i32_3 = arith.constant 0 : i32
    %21 = vector.broadcast %c0_i32_3 : i32 to vector<1x8xi32>
    %22 = arith.subi %21, %11 : vector<1x8xi32>
    %c1_i32_4 = arith.constant 1 : i32
    %23 = vector.broadcast %c1_i32_4 : i32 to vector<1x8xi32>
    %24 = arith.subi %22, %23 : vector<1x8xi32>
    %25 = arith.select %20, %11, %24 : vector<1x8xi1>, vector<1x8xi32>
    %c0_5 = arith.constant 0 : index
    %c0_6 = arith.constant 0 : index
    %26 = vector.load %arg2[%c0_5, %c0_6] : memref<1x8xi32, #tpu.memory_space<vmem>>, vector<1x8xi32>
    tpu.vector_store %arg2[%c0_5, %c0_6], %25 {strides = array<i32>} : memref<1x8xi32, #tpu.memory_space<vmem>>, vector<1x8xi32>,
    return
  }
  func.func @transform_0(%arg0: i32) -> (i32, i32) {
    %c0_i32 = arith.constant 0 : i32
    %c0_i32_0 = arith.constant 0 : i32
    return %c0_i32, %arg0 : i32, i32
  }
  func.func @transform_1(%arg0: i32) -> (i32, i32) {
    %c0_i32 = arith.constant 0 : i32
    %c0_i32_0 = arith.constant 0 : i32
    return %c0_i32, %arg0 : i32, i32
  }
}

</mosaic_0001>

<llo_original>
// kernel: _ctc_packed_call.1
$region0: #{_ctc_packed_call.1}
  #allocation0 [shape = 'u32[]', space=smem, size = 0x4, offset = 0x4, fixed_abs, tag = 'smem constant byte address 0x4 - core index']
  #allocation1 [shape = 'u32[72,128]{1,0:T(1,128)}', space=vmem, size = 0x9000, scoped, tag = 'internal scratch']
  %s0 = inlined_call_operand.vmem [shape: f32[32,8], index: 0, kind: input, shape index: {}]
  %s1 = inlined_call_operand.hbm [shape: s32[1,8], index: 1, kind: output, shape index: {}]
  %s2 = sld [smem:[#allocation0]]
  $region14: #{_ctc_packed_call.1} parent=0
    _
  %s4 = ssub.s32 1, %s2
  %s5 = scalar_select 0, %s4, %s2
  $region1: #{_ctc_packed_call.1} parent=0
    #allocation2 [shape = 'u8[512]{0}', space=vmem, size = 0x400, scoped, tag = 'output window, operand 0, single buffered']
    #allocation3 [shape = 's32[1]{0}', space=sflag, size = 0x4, scoped, tag = 'scoped memory for _ctc_packed_call.1']
    %6 = vsyncpa [#allocation3], 0
    // Predicated region
    $region2: #{_ctc_packed_call.1} parent=1 // pred_check
      _
    $region3: #{_ctc_packed_call.1} parent=1 // pred_check_branch
      %8 = sbr.rel (0) target = $region5
    $region4: #{_ctc_packed_call.1} parent=1 // pred_region
      _
    $region5: #{_ctc_packed_call.1} parent=1 // pred_fallthru
      _
    %v9 = vld [vmem:[%s0] sm:$0xff]
    %v10 = vld [vmem:[%s0 + $0x8] sm:$0xff]
    %v11 = vld [vmem:[%s0 + $0x10] sm:$0xff]
    %v12 = vld [vmem:[%s0 + $0x18] sm:$0xff]
    %vm13 = vcmask 64512
    %v14 = vsel %vm13, %v9, -inf
    %v15 = vsel %vm13, %v10, -inf
    %v16 = vsel %vm13, %v11, -inf
    %v17 = vsel %vm13, %v12, -inf
    %v18 = vmax.f32 %v14, %v15
    %v19 = vmax.f32 %v16, %v17
    %v20 = vmax.f32 %v18, %v19
    %v21 = vrot.slane %v20, 4
    %v22 = vmax.f32 %v20, %v21
    %v23 = vrot.slane %v22, 2
    %v24 = vmax.f32 %v22, %v23
    %v25 = vrot.slane %v24, 1
    %v26 = vmax.f32 %v24, %v25
    %v27 = vlaneseq
    %v28 = vshrl.u32 %v27, 7
    %v29 = vadd.s32 %v28, 8
    %v30 = vadd.s32 %v28, 16
    %v31 = vadd.s32 %v28, 24
    %vm32 = vcmp.eq.f32.partialorder %v9, %v26
    %vm33 = vcmp.eq.f32.partialorder %v10, %v26
    %vm34 = vcmp.eq.f32.partialorder %v11, %v26
    %vm35 = vcmp.eq.f32.partialorder %v12, %v26
    %v36 = vsel %vm32, %v28, 32
    %v37 = vsel %vm33, %v29, 32
    %v38 = vsel %vm34, %v30, 32
    %v39 = vsel %vm35, %v31, 32
    %v40 = vsel %vm13, %v36, 2147483647
    %v41 = vsel %vm13, %v37, 2147483647
    %v42 = vsel %vm13, %v38, 2147483647
    %v43 = vsel %vm13, %v39, 2147483647
    %vm44 = vcmp.lt.s32.totalorder %v40, %v41
    %v45 = vsel %vm44, %v40, %v41
    %vm46 = vcmp.lt.s32.totalorder %v42, %v43
    %v47 = vsel %vm46, %v42, %v43
    %vm48 = vcmp.lt.s32.totalorder %v45, %v47
    %v49 = vsel %vm48, %v45, %v47
    %v50 = vrot.slane %v49, 4
    %vm51 = vcmp.lt.s32.totalorder %v49, %v50
    %v52 = vsel %vm51, %v49, %v50
    %v53 = vrot.slane %v52, 2
    %vm54 = vcmp.lt.s32.totalorder %v52, %v53
    %v55 = vsel %vm54, %v52, %v53
    %v56 = vrot.slane %v55, 1
    %vm57 = vcmp.lt.s32.totalorder %v55, %v56
    %v58 = vsel %vm57, %v55, %v56
    %vm59 = vcmp.lt.s32.totalorder %v58, 31
    %v60 = vsel %vm59, %v58, 31
    %vm61 = vcmask 1047616
    %62 = vrot.lane.b32.xlu0 %v60, 8
    %v63 = vpop.permute.xlu0 %62
    %v64 = vsel %vm61, %v63, %v60
    %65 = vrot.lane.b32.xlu0 %v64, 8
    %v66 = vpop.permute.xlu0 %65
    %v67 = vsel %vm61, %v66, %v60
    %v68 = vlaneseq
    %v69 = vand.u32 %v68, 127
    %vm70 = vcmp.eq.s32.totalorder %v69, 0
    %71 = vrot.lane.b32.xlu0 %v67, 121
    %v72 = vpop.permute.xlu0 %71
    %vm73 = vcmp.ne.s32.totalorder %v60, %v72
    %vm74 = vmor %vm70, %vm73
    %vm75 = vcmp.ne.s32.totalorder %v60, 0
    %vm76 = vmand %vm74, %vm75
    %v77 = vsub.s32 0, %v60
    %v78 = vsub.s32 %v77, 1
    %v79 = vsel %vm76, %v60, %v78
    %vm80 = vcmask 57344
    %81 = vst.msk [vmem:[#allocation2] sm:$0x1] %vm80, %v79
    // Predicated region
    $region6: #{_ctc_packed_call.1} parent=1 // pred_check
      _
    $region7: #{_ctc_packed_call.1} parent=1 // pred_check_branch
      %83 = sbr.rel (0) target = $region9
    $region8: #{_ctc_packed_call.1} parent=1 // pred_region
      %85 = vsyncadd [#allocation3], 0
      %s87 = sshll.u32 [#allocation2], 4
      %s88 = int_to_ptr.vmem [resolvable:$true] %s87
      %s89 = sshll.u32 %s1, 4
      %s90 = int_to_ptr.hbm [resolvable:$true] %s89
      %92 = dma.vmem_to_hbm [thread:$0]  %s88, 16, %s90, [#allocation3]
    $region9: #{_ctc_packed_call.1} parent=1 // pred_fallthru
      _
    // Predicated region
    $region10: #{_ctc_packed_call.1} parent=1 // pred_check
      _
    $region11: #{_ctc_packed_call.1} parent=1 // pred_check_branch
      %94 = sbr.rel (0) target = $region13
    $region12: #{_ctc_packed_call.1} parent=1 // pred_region
      %96 = dma.done [#allocation3], 16
    $region13: #{_ctc_packed_call.1} parent=1 // pred_fallthru
      _
    %97 = vsyncpa [#allocation3], 1

</llo_original>
